<compile_context>
chip_gen: v7x
topology: tpu7x:2x2x1
jax: 0.10.0
libtpu: 0.0.40
codegen_flags: <defaults>
</compile_context>

<pallas_src>
import functools
import math

import jax
import jax.numpy as jnp
from jax.experimental import pallas as pl
from jax.experimental.pallas import tpu as pltpu

_NEG_BIG = -1.0e30  # "minus infinity" bias for padded logit columns (f32-safe)


def _adaptive_avg_pool_matrix(in_len: int, out_len: int) -> jnp.ndarray:
    """(in_len, out_len) matrix P s.t. x @ P == AdaptiveAvgPool1d(out_len)(x)."""
    cols = []
    for i in range(out_len):
        start = math.floor(i * in_len / out_len)
        end = math.ceil((i + 1) * in_len / out_len)
        col = [0.0] * in_len
        w = 1.0 / (end - start)
        for j in range(start, end):
            col[j] = w
        cols.append(col)
    return jnp.asarray(cols, dtype=jnp.float32).T  # (in_len, out_len)


def _round_up(v: int, m: int) -> int:
    return ((v + m - 1) // m) * m


def _vmem_capacity_bytes() -> int:
    """Physical per-core VMEM (64 MiB on v7x, 128 MiB on v5e/v6e).  Falls back
    to the most conservative value if the query is unavailable."""
    try:
        cap = int(pltpu.get_tpu_info().vmem_capacity_bytes)
        if cap > 0:
            return cap
    except Exception:
        pass
    return 64 * 1024 * 1024  # v7x per-TensorCore VMEM


def _tile_vmem_need(tb: int, L: int, Hp: int, Op: int, O: int) -> int:
    """Estimated VMEM footprint for one batch tile of the pipeline."""
    return (
        2 * tb * L * 4                                    # double-buffered f32 x tile
        + 2 * tb * O * 4                                  # double-buffered f32 out tile
        + 2 * ((L * Hp + Hp * Op) * 2 + (Hp + Op) * 4)    # resident weights/biases
        + 2 * tb * (Hp + Op) * 4                          # f32 intermediates (h, logits) + temps
    )


def _pick_batch_tile(batch: int, L: int, Hp: int, Op: int, O: int, budget: int) -> int:
    """Largest batch tile whose full footprint (x/out double buffers, resident
    weights, f32 intermediates) fits the generation-aware VMEM budget, capped so
    large batches still give the pipeline / both v7x TCs several grid steps."""
    if batch <= 256:
        return batch  # block == full dim -> always a legal BlockSpec
    tb = 256  # multiple of 128 (v5e MXU-M) and 256 (v6e/v7x MXU-M)
    while tb * 2 <= min(batch, 2048) and _tile_vmem_need(tb * 2, L, Hp, Op, O) <= budget:
        tb *= 2
    if batch > 512:
        # Keep >= ~8 grid steps: shards across v7x's two TensorCores and gives
        # BlockSpec double-buffering enough steps to actually overlap DMA.
        tb = max(256, min(tb, _round_up(batch // 8, 256)))
    return tb


def _pooling_classifier_kernel(x_ref, w1_ref, b1_ref, w2_ref, b2_ref, o_ref, *, out_cols):
    # x tile arrives f32 (no separate wrapper-side convert pass over HBM); the
    # bf16 cast happens here on the VPU and hides under the DMA pipeline.
    xb = x_ref[...].astype(jnp.bfloat16)                                    # (TB, L)
    h = jnp.dot(xb, w1_ref[...],
                preferred_element_type=jnp.float32) + b1_ref[...]           # (TB, Hp) f32
    h = jnp.maximum(h, 0.0)                                                  # ReLU (f32 VPU)
    # view(batch, -1) is a no-op for 2-D activations.
    # Second dot: bf16 x bf16 operands (full MXU rate on all generations),
    # f32 accumulation; bias add and softmax stay f32.
    logits = jnp.dot(h.astype(jnp.bfloat16), w2_ref[...],
                     preferred_element_type=jnp.float32) + b2_ref[...]       # (TB, Op) f32
    # log_softmax over dim=1 on the lane-dense padded width; padded columns carry
    # a -1e30 bias, so exp underflows to exactly 0 in f32 and they never perturb
    # the max / logsumexp.
    m = jnp.max(logits, axis=-1, keepdims=True)
    shifted = logits - m
    lse = jnp.log(jnp.sum(jnp.exp(shifted), axis=-1, keepdims=True))
    # Store only the real classes: out block is (TB, O), so the padded columns
    # never hit HBM (no 16x-padded writeback + wrapper slice pass).
    o_ref[...] = (shifted - lse)[:, :out_cols]


def pooling_classifier_forward(x, pool_mat, w1, b1, w2, b2):
    """x: (B, L) f32; pool_mat: (L, S); w1: (S, H); b1: (H,); w2: (H, O); b2: (O,).
    Weights are stored pre-transposed as (in, out).  Returns (B, O) f32 log-probs."""
    B, L = x.shape
    S, H = w1.shape
    O = w2.shape[1]

    # Fold AdaptiveAvgPool1d into Linear1 (both linear -> exact).
    w_eff = jnp.dot(pool_mat, w1, precision=jax.lax.Precision.HIGHEST)  # (L, H)

    # Pad the contraction dim only when it is large and misaligned (lane-dense x
    # loads + full MXU K); for small L the padding traffic exceeds the gain.
    Lp = _round_up(L, 128) if (L >= 256 and L % 128 != 0) else L
    if Lp != L:
        x = jnp.pad(x, ((0, 0), (0, Lp - L)))

    # Feature dims padded to lane-dense multiples of 128 (in-kernel only).
    Hp = _round_up(max(H, 128), 128)
    Op = _round_up(max(O, 128), 128)

    w1p = jnp.zeros((Lp, Hp), jnp.float32).at[:L, :H].set(w_eff).astype(jnp.bfloat16)
    b1p = jnp.zeros((1, Hp), jnp.float32).at[0, :H].set(b1.reshape(-1))
    w2p = jnp.zeros((Hp, Op), jnp.float32).at[:H, :O].set(w2).astype(jnp.bfloat16)
    b2p = jnp.full((1, Op), _NEG_BIG, jnp.float32).at[0, :O].set(b2.reshape(-1))

    vmem_cap = _vmem_capacity_bytes()
    TB = _pick_batch_tile(B, Lp, Hp, Op, O, budget=(vmem_cap * 7) // 10)
    grid = (pl.cdiv(B, TB),)
    # Ragged last tile (B % TB != 0): Pallas pads the block; garbage rows flow
    # through log_softmax independently and the out-of-bounds rows are clipped on
    # writeback, so in-bounds rows are unaffected (relied-upon behavior).

    need = _tile_vmem_need(TB, Lp, Hp, Op, O)
    vmem_limit = int(min(max(need + need // 2, 16 * 1024 * 1024), (vmem_cap * 3) // 4))

    kernel = functools.partial(_pooling_classifier_kernel, out_cols=O)

    grid_spec = pltpu.PrefetchScalarGridSpec(
        num_scalar_prefetch=0,
        grid=grid,
        in_specs=[
            pl.BlockSpec((TB, Lp), lambda i: (i, 0)),   # x tile (f32, pipelined per step)
            # Constant index_maps -> fetched once, VMEM-resident across steps.
            pl.BlockSpec((Lp, Hp), lambda i: (0, 0)),   # W_eff (bf16)
            pl.BlockSpec((1, Hp), lambda i: (0, 0)),    # b1    (f32)
            pl.BlockSpec((Hp, Op), lambda i: (0, 0)),   # W2    (bf16)
            pl.BlockSpec((1, Op), lambda i: (0, 0)),    # b2    (f32, -1e30 in padding)
        ],
        out_specs=pl.BlockSpec((TB, O), lambda i: (i, 0)),  # unpadded output tile
    )

    cost = pl.CostEstimate(
        flops=2 * B * (Lp * Hp + Hp * Op),
        transcendentals=B * Op,
        bytes_accessed=(B * Lp * 4 + w1p.size * 2 + w2p.size * 2
                        + b1p.size * 4 + b2p.size * 4 + B * O * 4),
    )

    return pl.pallas_call(
        kernel,
        out_shape=jax.ShapeDtypeStruct((B, O), jnp.float32),
        grid_spec=grid_spec,
        compiler_params=pltpu.CompilerParams(
            dimension_semantics=("parallel",),  # batch tiles independent; uses both v7x TCs
            vmem_limit_bytes=vmem_limit,
        ),
        cost_estimate=cost,
    )(x, w1p, b1p, w2p, b2p)


def _reference_forward_bf16(x, pool_mat, w1, b1, w2, b2):
    """Mirrors the kernel's numerics: bf16 dot operands, f32 accumulation/softmax."""
    w_eff = jnp.dot(pool_mat, w1,
                    precision=jax.lax.Precision.HIGHEST).astype(jnp.bfloat16)
    xb = x.astype(jnp.bfloat16).astype(jnp.float32)
    h = jnp.dot(xb, w_eff.astype(jnp.float32),
                precision=jax.lax.Precision.HIGHEST) + b1.reshape(1, -1)
    h = jnp.maximum(h, 0.0)
    logits = jnp.dot(h.astype(jnp.bfloat16).astype(jnp.float32),
                     w2.astype(jnp.bfloat16).astype(jnp.float32),
                     precision=jax.lax.Precision.HIGHEST) + b2.reshape(1, -1)
    return jax.nn.log_softmax(logits, axis=1)


def _reference_forward_f32(x, pool_mat, w1, b1, w2, b2):
    """Pure-f32 semantics of the original PyTorch module."""
    pooled = jnp.dot(x, pool_mat, precision=jax.lax.Precision.HIGHEST)
    h = jnp.maximum(jnp.dot(pooled, w1, precision=jax.lax.Precision.HIGHEST)
                    + b1.reshape(1, -1), 0.0)
    logits = jnp.dot(h, w2, precision=jax.lax.Precision.HIGHEST) + b2.reshape(1, -1)
    return jax.nn.log_softmax(logits, axis=1)


if __name__ == "__main__":
    # Small shapes consistent with the module's forward pass.
    batch = 2
    in_features = 64          # sequence length fed to AdaptiveAvgPool1d
    after_pooling_size = 16
    hidden_layer_size = 32
    out_features = 8

    key = jax.random.PRNGKey(0)
    kx, k1, k2, k3, k4 = jax.random.split(key, 5)

    x = jax.random.normal(kx, (batch, in_features), dtype=jnp.float32)

    # Deterministic PyTorch-Linear-style init, stored pre-transposed as (in, out).
    bound1 = 1.0 / math.sqrt(after_pooling_size)
    w1 = jax.random.uniform(k1, (after_pooling_size, hidden_layer_size),
                            minval=-bound1, maxval=bound1, dtype=jnp.float32)
    b1 = jax.random.uniform(k2, (hidden_layer_size,),
                            minval=-bound1, maxval=bound1, dtype=jnp.float32)
    bound2 = 1.0 / math.sqrt(hidden_layer_size)
    w2 = jax.random.uniform(k3, (hidden_layer_size, out_features),
                            minval=-bound2, maxval=bound2, dtype=jnp.float32)
    b2 = jax.random.uniform(k4, (out_features,),
                            minval=-bound2, maxval=bound2, dtype=jnp.float32)

    pool_mat = _adaptive_avg_pool_matrix(in_features, after_pooling_size)

    out = pooling_classifier_forward(x, pool_mat, w1, b1, w2, b2)
    out = jax.block_until_ready(out)
    assert out.shape == (batch, out_features)

    # Exact-numerics check (same bf16 operand quantization as the kernel).
    ref_bf16 = _reference_forward_bf16(x, pool_mat, w1, b1, w2, b2)
    assert jnp.allclose(out, ref_bf16, atol=1e-4, rtol=1e-4), (
        "bf16-path mismatch", float(jnp.max(jnp.abs(out - ref_bf16))))

    # Semantic-fidelity check against the pure-f32 PyTorch math (explicit contract:
    # bf16 dot operands are an inference-grade approximation of the f32 module).
    ref_f32 = _reference_forward_f32(x, pool_mat, w1, b1, w2, b2)
    assert jnp.allclose(out, ref_f32, atol=2e-2, rtol=2e-2), (
        "f32-semantics mismatch", float(jnp.max(jnp.abs(out - ref_f32))))

    print("KERNEL_OK")
</pallas_src>

<mosaic_0001>
module attributes {stable_mosaic.version = 11 : i64} {
  func.func @_pooling_classifier_kernel(%arg0: i32, %arg1: memref<2x64xf32, #tpu.memory_space<vmem>>, %arg2: memref<64x128xbf16, #tpu.memory_space<vmem>>, %arg3: memref<1x128xf32, #tpu.memory_space<vmem>>, %arg4: memref<128x128xbf16, #tpu.memory_space<vmem>>, %arg5: memref<1x128xf32, #tpu.memory_space<vmem>>, %arg6: memref<2x8xf32, #tpu.memory_space<vmem>>) attributes {dimension_semantics = [#tpu.dimension_semantics<parallel>], iteration_bounds = array<i64: 1>, scalar_prefetch = 0 : i64, scratch_operands = 0 : i64, tpu.core_type = #tpu.core_type<tc>, window_params = [{transform_indices = @transform_0, window_bounds = array<i64: 2, 64>}, {pipeline_mode = #tpu.pipeline_mode<synchronous>, transform_indices = @transform_1, window_bounds = array<i64: 64, 128>}, {pipeline_mode = #tpu.pipeline_mode<synchronous>, transform_indices = @transform_2, window_bounds = array<i64: 1, 128>}, {pipeline_mode = #tpu.pipeline_mode<synchronous>, transform_indices = @transform_3, window_bounds = array<i64: 128, 128>}, {pipeline_mode = #tpu.pipeline_mode<synchronous>, transform_indices = @transform_4, window_bounds = array<i64: 1, 128>}, {transform_indices = @transform_5, window_bounds = array<i64: 2, 8>}]} {
    %c0 = arith.constant 0 : index
    %c0_0 = arith.constant 0 : index
    %0 = vector.load %arg1[%c0, %c0_0] : memref<2x64xf32, #tpu.memory_space<vmem>>, vector<2x64xf32>
    %1 = arith.truncf %0 : vector<2x64xf32> to vector<2x64xbf16>
    %c0_1 = arith.constant 0 : index
    %c0_2 = arith.constant 0 : index
    %2 = vector.load %arg2[%c0_1, %c0_2] : memref<64x128xbf16, #tpu.memory_space<vmem>>, vector<64x128xbf16>
    %cst = arith.constant dense<0.000000e+00> : vector<2x128xf32>
    %3 = tpu.matmul %1, %2, %cst {dimension_numbers = #tpu.dot_dimension_numbers<[1], [0], [0], [1], [0, 0, 1, 1], [], []>} : vector<2x64xbf16>, vector<64x128xbf16>, vector<2x128xf32> -> vector<2x128xf32>
    %c0_3 = arith.constant 0 : index
    %c0_4 = arith.constant 0 : index
    %4 = vector.load %arg3[%c0_3, %c0_4] : memref<1x128xf32, #tpu.memory_space<vmem>>, vector<1x128xf32>
    %5 = vector.broadcast %4 : vector<1x128xf32> to vector<2x128xf32>
    %6 = arith.addf %3, %5 : vector<2x128xf32>
    %cst_5 = arith.constant 0.000000e+00 : f32
    %7 = vector.broadcast %cst_5 : f32 to vector<2x128xf32>
    %8 = arith.maximumf %6, %7 : vector<2x128xf32>
    %9 = arith.truncf %8 : vector<2x128xf32> to vector<2x128xbf16>
    %c0_6 = arith.constant 0 : index
    %c0_7 = arith.constant 0 : index
    %10 = vector.load %arg4[%c0_6, %c0_7] : memref<128x128xbf16, #tpu.memory_space<vmem>>, vector<128x128xbf16>
    %cst_8 = arith.constant dense<0.000000e+00> : vector<2x128xf32>
    %11 = tpu.matmul %9, %10, %cst_8 {dimension_numbers = #tpu.dot_dimension_numbers<[1], [0], [0], [1], [0, 0, 1, 1], [], []>} : vector<2x128xbf16>, vector<128x128xbf16>, vector<2x128xf32> -> vector<2x128xf32>
    %c0_9 = arith.constant 0 : index
    %c0_10 = arith.constant 0 : index
    %12 = vector.load %arg5[%c0_9, %c0_10] : memref<1x128xf32, #tpu.memory_space<vmem>>, vector<1x128xf32>
    %13 = vector.broadcast %12 : vector<1x128xf32> to vector<2x128xf32>
    %14 = arith.addf %11, %13 : vector<2x128xf32>
    %cst_11 = arith.constant dense<0xFF800000> : vector<2xf32>
    %15 = vector.multi_reduction <maximumf>, %14, %cst_11 [1] : vector<2x128xf32> to vector<2xf32>
    %16 = vector.shape_cast %15 : vector<2xf32> to vector<2x1xf32>
    %17 = vector.broadcast %16 : vector<2x1xf32> to vector<2x128xf32>
    %18 = arith.subf %14, %17 : vector<2x128xf32>
    %19 = math.exp %18 : vector<2x128xf32>
    %cst_12 = arith.constant dense<0.000000e+00> : vector<2xf32>
    %20 = vector.multi_reduction <add>, %19, %cst_12 [1] : vector<2x128xf32> to vector<2xf32>
    %21 = vector.shape_cast %20 : vector<2xf32> to vector<2x1xf32>
    %22 = math.log %21 : vector<2x1xf32>
    %23 = vector.broadcast %22 : vector<2x1xf32> to vector<2x128xf32>
    %24 = arith.subf %18, %23 : vector<2x128xf32>
    %25 = vector.extract_strided_slice %24 {offsets = [0, 0], sizes = [2, 8], strides = [1, 1]} : vector<2x128xf32> to vector<2x8xf32>
    %c0_13 = arith.constant 0 : index
    %c0_14 = arith.constant 0 : index
    %26 = vector.load %arg6[%c0_13, %c0_14] : memref<2x8xf32, #tpu.memory_space<vmem>>, vector<2x8xf32>
    tpu.vector_store %arg6[%c0_13, %c0_14], %25 {strides = array<i32>} : memref<2x8xf32, #tpu.memory_space<vmem>>, vector<2x8xf32>,
    return
  }
  func.func @transform_0(%arg0: i32) -> (i32, i32) {
    %c0_i32 = arith.constant 0 : i32
    %c0_i32_0 = arith.constant 0 : i32
    return %arg0, %c0_i32 : i32, i32
  }
  func.func @transform_1(%arg0: i32) -> (i32, i32) {
    %c0_i32 = arith.constant 0 : i32
    %c0_i32_0 = arith.constant 0 : i32
    %c0_i32_1 = arith.constant 0 : i32
    return %c0_i32, %c0_i32_0 : i32, i32
  }
  func.func @transform_2(%arg0: i32) -> (i32, i32) {
    %c0_i32 = arith.constant 0 : i32
    %c0_i32_0 = arith.constant 0 : i32
    %c0_i32_1 = arith.constant 0 : i32
    return %c0_i32, %c0_i32_0 : i32, i32
  }
  func.func @transform_3(%arg0: i32) -> (i32, i32) {
    %c0_i32 = arith.constant 0 : i32
    %c0_i32_0 = arith.constant 0 : i32
    %c0_i32_1 = arith.constant 0 : i32
    return %c0_i32, %c0_i32_0 : i32, i32
  }
  func.func @transform_4(%arg0: i32) -> (i32, i32) {
    %c0_i32 = arith.constant 0 : i32
    %c0_i32_0 = arith.constant 0 : i32
    %c0_i32_1 = arith.constant 0 : i32
    return %c0_i32, %c0_i32_0 : i32, i32
  }
  func.func @transform_5(%arg0: i32) -> (i32, i32) {
    %c0_i32 = arith.constant 0 : i32
    %c0_i32_0 = arith.constant 0 : i32
    return %arg0, %c0_i32 : i32, i32
  }
}

</mosaic_0001>

<llo_original>
// kernel: tpu_custom_call.1
$region0: #{tpu_custom_call.1}
  #allocation0 [shape = 'u32[]', space=smem, size = 0x4, offset = 0x4, fixed_abs, tag = 'smem constant byte address 0x4 - core index']
  #allocation1 [shape = 'u32[144,128]{1,0:T(1,128)}', space=vmem, size = 0x12000, scoped, tag = 'internal scratch']
  %s0 = inlined_call_operand.hbm [shape: f32[2,64], index: 0, kind: input, shape index: {}]
  %s1 = inlined_call_operand.hbm [shape: bf16[64,128], index: 1, kind: input, shape index: {}]
  %s2 = inlined_call_operand.vmem [shape: f32[1,128], index: 2, kind: input, shape index: {}]
  %s3 = inlined_call_operand.hbm [shape: bf16[128,128], index: 3, kind: input, shape index: {}]
  %s4 = inlined_call_operand.vmem [shape: f32[1,128], index: 4, kind: input, shape index: {}]
  %s5 = inlined_call_operand.hbm [shape: f32[2,8], index: 5, kind: output, shape index: {}]
  %s6 = sld [smem:[#allocation0]]
  $region42: #{tpu_custom_call.1} parent=0
    _
  %s8 = ssub.s32 1, %s6
  %s9 = scalar_select 0, %s8, %s6
  $region1: #{tpu_custom_call.1} parent=0
    #allocation2 [shape = 'u8[1024]{0}', space=vmem, size = 0x400, scoped, tag = 'input window, operand 0, single buffered']
    #allocation3 [shape = 's32[1]{0}', space=sflag, size = 0x4, scoped, tag = 'scoped memory for tpu_custom_call.1']
    #allocation4 [shape = 's32[1]{0}', space=sflag, size = 0x4, scoped, tag = 'scoped memory for tpu_custom_call.1']
    #allocation5 [shape = 'u8[16384]{0}', space=vmem, size = 0x4000, scoped, tag = 'input window, operand 1, single buffered']
    #allocation6 [shape = 's32[1]{0}', space=sflag, size = 0x4, scoped, tag = 'scoped memory for tpu_custom_call.1']
    #allocation7 [shape = 'u8[32768]{0}', space=vmem, size = 0x8000, scoped, tag = 'input window, operand 3, single buffered']
    #allocation8 [shape = 'u8[1024]{0}', space=vmem, size = 0x400, scoped, tag = 'output window, operand 0, single buffered']
    %10 = vsyncpa [#allocation3], 0
    %11 = vsyncpa [#allocation6], 0
    %12 = vsyncpa [#allocation4], 0
    // Predicated region
    $region2: #{tpu_custom_call.1} parent=1 // pred_check
      _
    $region3: #{tpu_custom_call.1} parent=1 // pred_check_branch
      %14 = sbr.rel (0) target = $region5
    $region4: #{tpu_custom_call.1} parent=1 // pred_region
      %s16 = ssub.s32 32, 32
      %17 = vsyncadd [#allocation3], %s16
      %s19 = sshll.u32 [#allocation2], 4
      %s20 = int_to_ptr.vmem [resolvable:$true] %s19
      %22 = dma.hbm_to_vmem [thread:$0]  %s0, 32, %s20, [#allocation3]
    $region5: #{tpu_custom_call.1} parent=1 // pred_fallthru
      _
    // Predicated region
    $region6: #{tpu_custom_call.1} parent=1 // pred_check
      _
    $region7: #{tpu_custom_call.1} parent=1 // pred_check_branch
      %24 = sbr.rel (0) target = $region9
    $region8: #{tpu_custom_call.1} parent=1 // pred_region
      %s26 = ssub.s32 512, 512
      %27 = vsyncadd [#allocation6], %s26
      %s28 = sshll.u32 [#allocation5], 4
      %s29 = int_to_ptr.vmem [resolvable:$true] %s28
      %34 = dma.hbm_to_vmem [thread:$0]  %s1, 512, %s29, [#allocation6], 64, 64, 4
    $region9: #{tpu_custom_call.1} parent=1 // pred_fallthru
      _
    // Predicated region
    $region10: #{tpu_custom_call.1} parent=1 // pred_check
      _
    $region11: #{tpu_custom_call.1} parent=1 // pred_check_branch
      %36 = sbr.rel (0) target = $region13
    $region12: #{tpu_custom_call.1} parent=1 // pred_region
      _
    $region13: #{tpu_custom_call.1} parent=1 // pred_fallthru
      _
    // Predicated region
    $region14: #{tpu_custom_call.1} parent=1 // pred_check
      _
    $region15: #{tpu_custom_call.1} parent=1 // pred_check_branch
      %38 = sbr.rel (0) target = $region17
    $region16: #{tpu_custom_call.1} parent=1 // pred_region
      %s40 = ssub.s32 1024, 1024
      %41 = vsyncadd [#allocation6], %s40
      %s42 = sshll.u32 [#allocation7], 4
      %s43 = int_to_ptr.vmem [resolvable:$true] %s42
      %48 = dma.hbm_to_vmem [thread:$0]  %s3, 1024, %s43, [#allocation6], 64, 64, 4
    $region17: #{tpu_custom_call.1} parent=1 // pred_fallthru
      _
    // Predicated region
    $region18: #{tpu_custom_call.1} parent=1 // pred_check
      _
    $region19: #{tpu_custom_call.1} parent=1 // pred_check_branch
      %50 = sbr.rel (0) target = $region21
    $region20: #{tpu_custom_call.1} parent=1 // pred_region
      _
    $region21: #{tpu_custom_call.1} parent=1 // pred_fallthru
      _
    // Predicated region
    $region22: #{tpu_custom_call.1} parent=1 // pred_check
      _
    $region23: #{tpu_custom_call.1} parent=1 // pred_check_branch
      %52 = sbr.rel (0) target = $region25
    $region24: #{tpu_custom_call.1} parent=1 // pred_region
      %53 = dma.done [#allocation3], 32
    $region25: #{tpu_custom_call.1} parent=1 // pred_fallthru
      _
    // Predicated region
    $region26: #{tpu_custom_call.1} parent=1 // pred_check
      _
    $region27: #{tpu_custom_call.1} parent=1 // pred_check_branch
      %55 = sbr.rel (0) target = $region29
    $region28: #{tpu_custom_call.1} parent=1 // pred_region
      %56 = dma.done [#allocation6], 512
    $region29: #{tpu_custom_call.1} parent=1 // pred_fallthru
      _
    // Predicated region
    $region30: #{tpu_custom_call.1} parent=1 // pred_check
      _
    $region31: #{tpu_custom_call.1} parent=1 // pred_check_branch
      %58 = sbr.rel (0) target = $region33
    $region32: #{tpu_custom_call.1} parent=1 // pred_region
      %59 = dma.done [#allocation6], 1024
    $region33: #{tpu_custom_call.1} parent=1 // pred_fallthru
      _
    %v61 = vld [vmem:[#allocation2] sm:$0x3]
    %v62 = vpack.c.bf16 %v61, %v61
    %v63 = vld [vmem:[#allocation5] sm:$0xf]
    %v64 = vld [vmem:[#allocation5 + $0x4] sm:$0xf]
    %v65 = vld [vmem:[#allocation5 + $0x8] sm:$0xf]
    %v66 = vld [vmem:[#allocation5 + $0xc] sm:$0xf]
    %v67 = vld [vmem:[#allocation5 + $0x10] sm:$0xf]
    %v68 = vld [vmem:[#allocation5 + $0x14] sm:$0xf]
    %v69 = vld [vmem:[#allocation5 + $0x18] sm:$0xf]
    %v70 = vld [vmem:[#allocation5 + $0x1c] sm:$0xf]
    %v71 = vld [vmem:[%s2] sm:$0x1]
    %v73 = vlaneseq
    %v74 = vshrl.u32 %v73, 7
    %v75 = vsub.s32 0, %v74
    %v76 = vrot.slane %v71, %v75
    %v86 = vunpack.c.l.b16 %v63
    %v87 = vunpack.c.l.b16 %v64
    %v88 = vunpack.c.l.b16 %v65
    %v89 = vunpack.c.l.b16 %v66
    %v90 = vunpack.c.l.b16 %v67
    %v91 = vunpack.c.l.b16 %v68
    %v92 = vunpack.c.l.b16 %v69
    %v93 = vunpack.c.l.b16 %v70
    %v94 = vpack.c.b16 %v87, %v86
    %v95 = vpack.c.b16 %v89, %v88
    %v96 = vpack.c.b16 %v91, %v90
    %v97 = vpack.c.b16 %v93, %v92
    %vm102 = vcmask 523264
    %v104 = vsel %vm102, %v62, 0
    %106 = vmatprep.subr.bf16.mxu0 0
    %107 = vmatpush1.bf16.msra.mxu0 %v94
    %108 = vmatprep.subr.bf16.mxu0 0
    %109 = vmatpush1.bf16.msra.mxu0 %v95
    %110 = vmatprep.subr.bf16.mxu0 0
    %111 = vmatpush1.bf16.msra.mxu0 %v96
    %112 = vmatprep.subr.bf16.mxu0 0
    %113 = vmatpush1.bf16.msra.mxu0 %v97
    %114 = vmatprep.subr.bf16.mxu0 0
    %115 = vmatpush1.bf16.msra.mxu0 0
    %116 = vmatprep.subr.bf16.mxu0 0
    %117 = vmatpush1.bf16.msra.mxu0 0
    %118 = vmatprep.subr.bf16.mxu0 0
    %119 = vmatpush1.bf16.msra.mxu0 0
    %120 = vmatprep.subr.bf16.mxu0 0
    %121 = vmatpush1.bf16.msra.mxu0 0
    %122 = vmatprep.subr.bf16.mxu0 0
    %123 = vmatpush1.bf16.msra.mxu0 0
    %124 = vmatprep.subr.bf16.mxu0 0
    %125 = vmatpush1.bf16.msra.mxu0 0
    %126 = vmatprep.subr.bf16.mxu0 0
    %127 = vmatpush1.bf16.msra.mxu0 0
    %128 = vmatprep.subr.bf16.mxu0 0
    %129 = vmatpush1.bf16.msra.mxu0 0
    %130 = vmatprep.subr.bf16.mxu0 0
    %131 = vmatpush1.bf16.msra.mxu0 0
    %132 = vmatprep.subr.bf16.mxu0 0
    %133 = vmatpush1.bf16.msra.mxu0 0
    %134 = vmatprep.subr.bf16.mxu0 0
    %135 = vmatpush1.bf16.msra.mxu0 0
    %136 = vmatprep.subr.bf16.mxu0 0
    %137 = vmatpush1.bf16.msra.mxu0 0
    %138 = vmatprep.mubr.bf16.mxu0 0
    %139 = vmatmul.mubr.bf16.gmra.mrb[0].mxu0 %v104
    %v140 = vpop.f32.mrb[0].mxu0
    %v141 = vadd.f32 %v76, %v140
    %v142 = vpop.f32.mrb[0].mxu0
    %v143 = vpop.f32.mrb[0].mxu0
    %v144 = vpop.f32.mrb[0].mxu0
    %145 = vdwg.mxu0
    %v146 = vmax.f32 %v141, 0.0
    %v147 = vpack.c.bf16 %v146, %v146
    %v148 = vld [vmem:[#allocation7] sm:$0xf]
    %v149 = vld [vmem:[#allocation7 + $0x4] sm:$0xf]
    %v150 = vld [vmem:[#allocation7 + $0x8] sm:$0xf]
    %v151 = vld [vmem:[#allocation7 + $0xc] sm:$0xf]
    %v152 = vld [vmem:[#allocation7 + $0x10] sm:$0xf]
    %v153 = vld [vmem:[#allocation7 + $0x14] sm:$0xf]
    %v154 = vld [vmem:[#allocation7 + $0x18] sm:$0xf]
    %v155 = vld [vmem:[#allocation7 + $0x1c] sm:$0xf]
    %v156 = vld [vmem:[#allocation7 + $0x20] sm:$0xf]
    %v157 = vld [vmem:[#allocation7 + $0x24] sm:$0xf]
    %v158 = vld [vmem:[#allocation7 + $0x28] sm:$0xf]
    %v159 = vld [vmem:[#allocation7 + $0x2c] sm:$0xf]
    %v160 = vld [vmem:[#allocation7 + $0x30] sm:$0xf]
    %v161 = vld [vmem:[#allocation7 + $0x34] sm:$0xf]
    %v162 = vld [vmem:[#allocation7 + $0x38] sm:$0xf]
    %v163 = vld [vmem:[#allocation7 + $0x3c] sm:$0xf]
    %v164 = vld [vmem:[%s4] sm:$0x1]
    %v166 = vlaneseq
    %v167 = vshrl.u32 %v166, 7
    %v168 = vsub.s32 0, %v167
    %v169 = vrot.slane %v164, %v168
    %v187 = vunpack.c.l.b16 %v148
    %v188 = vunpack.c.l.b16 %v149
    %v189 = vunpack.c.l.b16 %v150
    %v190 = vunpack.c.l.b16 %v151
    %v191 = vunpack.c.l.b16 %v152
    %v192 = vunpack.c.l.b16 %v153
    %v193 = vunpack.c.l.b16 %v154
    %v194 = vunpack.c.l.b16 %v155
    %v195 = vunpack.c.l.b16 %v156
    %v196 = vunpack.c.l.b16 %v157
    %v197 = vunpack.c.l.b16 %v158
    %v198 = vunpack.c.l.b16 %v159
    %v199 = vunpack.c.l.b16 %v160
    %v200 = vunpack.c.l.b16 %v161
    %v201 = vunpack.c.l.b16 %v162
    %v202 = vunpack.c.l.b16 %v163
    %v203 = vpack.c.b16 %v188, %v187
    %v204 = vpack.c.b16 %v190, %v189
    %v205 = vpack.c.b16 %v192, %v191
    %v206 = vpack.c.b16 %v194, %v193
    %v207 = vpack.c.b16 %v196, %v195
    %v208 = vpack.c.b16 %v198, %v197
    %v209 = vpack.c.b16 %v200, %v199
    %v210 = vpack.c.b16 %v202, %v201
    %219 = vmatprep.subr.bf16.mxu0 0
    %220 = vmatpush1.bf16.msra.mxu0 %v203
    %221 = vmatprep.subr.bf16.mxu0 0
    %222 = vmatpush1.bf16.msra.mxu0 %v204
    %223 = vmatprep.subr.bf16.mxu0 0
    %224 = vmatpush1.bf16.msra.mxu0 %v205
    %225 = vmatprep.subr.bf16.mxu0 0
    %226 = vmatpush1.bf16.msra.mxu0 %v206
    %227 = vmatprep.subr.bf16.mxu0 0
    %228 = vmatpush1.bf16.msra.mxu0 %v207
    %229 = vmatprep.subr.bf16.mxu0 0
    %230 = vmatpush1.bf16.msra.mxu0 %v208
    %231 = vmatprep.subr.bf16.mxu0 0
    %232 = vmatpush1.bf16.msra.mxu0 %v209
    %233 = vmatprep.subr.bf16.mxu0 0
    %234 = vmatpush1.bf16.msra.mxu0 %v210
    %235 = vmatprep.subr.bf16.mxu0 0
    %236 = vmatpush1.bf16.msra.mxu0 0
    %237 = vmatprep.subr.bf16.mxu0 0
    %238 = vmatpush1.bf16.msra.mxu0 0
    %239 = vmatprep.subr.bf16.mxu0 0
    %240 = vmatpush1.bf16.msra.mxu0 0
    %241 = vmatprep.subr.bf16.mxu0 0
    %242 = vmatpush1.bf16.msra.mxu0 0
    %243 = vmatprep.subr.bf16.mxu0 0
    %244 = vmatpush1.bf16.msra.mxu0 0
    %245 = vmatprep.subr.bf16.mxu0 0
    %246 = vmatpush1.bf16.msra.mxu0 0
    %247 = vmatprep.subr.bf16.mxu0 0
    %248 = vmatpush1.bf16.msra.mxu0 0
    %249 = vmatprep.subr.bf16.mxu0 0
    %250 = vmatpush1.bf16.msra.mxu0 0
    %251 = vmatprep.mubr.bf16.mxu0 0
    %252 = vmatmul.mubr.bf16.gmra.mrb[0].mxu0 %v147
    %v253 = vpop.f32.mrb[0].mxu0
    %v254 = vadd.f32 %v169, %v253
    %v255 = vpop.f32.mrb[0].mxu0
    %v256 = vpop.f32.mrb[0].mxu0
    %v257 = vpop.f32.mrb[0].mxu0
    %258 = vdwg.mxu0
    %vm259 = vcmask 1041408
    %v260 = vsel %vm259, %v254, -inf
    %261 = vmax.xlane.f32.xlu0 %v260
    %v262 = vpop.xlane.xlu0 %261
    %v263 = vsub.f32 %v254, %v262
    %v264 = vmul.f32 %v263, 1.442695
    %v265 = vpow.pop %v264
    %v266 = vsel %vm259, %v265, 0.0
    %267 = vadd.xlane.f32.xlu0 %v266
    %v268 = vpop.xlane.xlu0 %267
    %v269 = vlog2.pop %v268
    %v270 = vmul.f32 %v269, 0.6931472
    %v271 = vsub.f32 %v263, %v270
    %vm272 = vcmask 58368
    %273 = vst.msk [vmem:[#allocation8] sm:$0x3] %vm272, %v271
    // Predicated region
    $region34: #{tpu_custom_call.1} parent=1 // pred_check
      _
    $region35: #{tpu_custom_call.1} parent=1 // pred_check_branch
      %275 = sbr.rel (0) target = $region37
    $region36: #{tpu_custom_call.1} parent=1 // pred_region
      %s277 = ssub.s32 32, 32
      %278 = vsyncadd [#allocation4], %s277
      %s280 = sshll.u32 [#allocation8], 4
      %s281 = int_to_ptr.vmem [resolvable:$true] %s280
      %283 = dma.vmem_to_hbm [thread:$0]  %s281, 32, %s5, [#allocation4]
    $region37: #{tpu_custom_call.1} parent=1 // pred_fallthru
      _
    // Predicated region
    $region38: #{tpu_custom_call.1} parent=1 // pred_check
      _
    $region39: #{tpu_custom_call.1} parent=1 // pred_check_branch
      %285 = sbr.rel (0) target = $region41
    $region40: #{tpu_custom_call.1} parent=1 // pred_region
      %286 = dma.done [#allocation4], 32
    $region41: #{tpu_custom_call.1} parent=1 // pred_fallthru
      _
    %287 = vsyncpa [#allocation3], 1
    %288 = vsyncpa [#allocation6], 1
    %289 = vsyncpa [#allocation4], 1

</llo_original>
